<compile_context>
chip_gen: v6e
topology: v6e:2x2x1
jax: 0.10.0
libtpu: 0.0.40
codegen_flags: <defaults>
</compile_context>

<pallas_src>
import jax
import jax.numpy as jnp
from jax.experimental import pallas as pl
from jax.experimental.pallas import tpu as pltpu


def _wrap_rnn_kernel(x_ref, w_ref, b_ref, y_ref):
    """Single-invocation kernel, everything in registers.

    x_ref : (T, 12)  xs with each (3,4) timestep flattened along lanes
    w_ref : (12, 12) block-diagonal weight diag(W^T, W^T, W^T)
    b_ref : (1, 12)  bias tiled 3x
    y_ref : (1, 12)  relu(final hidden state), flattened
    """
    T = x_ref.shape[0]

    # (1) Hoisted Linear for ALL timesteps: one (T,12)@(12,12) MXU dot + bias.
    z = (
        jnp.dot(
            x_ref[...],
            w_ref[...],
            preferred_element_type=jnp.float32,
            precision=jax.lax.Precision.HIGHEST,
        )
        + b_ref[...]
    )

    # (2) Batched MyDecisionGate: per-timestep sum of the 12 z elements is just
    #     a lane reduce per sublane row -> one reduce + one select for all T.
    s = jnp.sum(z, axis=-1, keepdims=True)        # (T, 1)
    zg = jnp.where(s > 0.0, z, -z)                # (T, 12)

    # (3) Serial recurrence: only add + tanh per step; h carried in registers.
    #     T is small and static here, so a static unroll is fine.
    # TODO(synk): for large / variable T, switch to lax.fori_loop(..., unroll=8)
    # over the gated slab to bound code size and avoid per-T recompiles.
    h = jnp.zeros((1, 12), jnp.float32)
    for t in range(T):
        h = jnp.tanh(zg[t:t + 1, :] + h)

    # (4) WrapRNN: relu(final hidden state); single tiny store.
    y_ref[...] = jnp.maximum(h, 0.0)


def wrap_rnn_forward(xs, weight, bias):
    """xs: (T, 3, 4); weight: (4, 4) torch Linear weight; bias: (4,).

    Returns relu(y) with shape (3, 4), matching WrapRNN.forward.
    """
    xs = jnp.asarray(xs, jnp.float32)
    T = xs.shape[0]
    if T == 0:
        # Loop body never runs in the reference: y stays zeros -> relu == zeros.
        return jnp.zeros((3, 4), jnp.float32)

    # Wrapper-side layout plumbing (plain XLA, done once):
    #   x_t (3,4) flattened row-major to a 12-lane row -> xs2d (T, 12)
    #   z_t = x_t @ W^T + b  <=>  x_flat @ diag(W^T, W^T, W^T) + tile(b, 3)
    xs2d = xs.reshape(T, 12)
    w_t = jnp.asarray(weight, jnp.float32).T                 # (4, 4)
    w_bd = jnp.kron(jnp.eye(3, dtype=jnp.float32), w_t)      # (12, 12) block-diag
    b2d = jnp.tile(jnp.asarray(bias, jnp.float32), 3).reshape(1, 12)

    y_flat = pl.pallas_call(
        _wrap_rnn_kernel,
        out_shape=jax.ShapeDtypeStruct((1, 12), jnp.float32),
        in_specs=[
            pl.BlockSpec(memory_space=pltpu.MemorySpace.VMEM),
            pl.BlockSpec(memory_space=pltpu.MemorySpace.VMEM),
            pl.BlockSpec(memory_space=pltpu.MemorySpace.VMEM),
        ],
        out_specs=pl.BlockSpec(memory_space=pltpu.MemorySpace.VMEM),
    )(xs2d, w_bd, b2d)

    return y_flat.reshape(3, 4)


def _reference(xs, weight, bias):
    """Pure-JAX reference mirroring the PyTorch module exactly."""
    h = jnp.zeros((3, 4), jnp.float32)
    y = jnp.zeros((3, 4), jnp.float32)
    for i in range(xs.shape[0]):
        z = jnp.dot(xs[i], weight.T, precision=jax.lax.Precision.HIGHEST) + bias
        z = jnp.where(jnp.sum(z) > 0.0, z, -z)
        new_h = jnp.tanh(z + h)
        y, h = new_h, new_h
    return jnp.maximum(y, 0.0)


if __name__ == "__main__":
    key = jax.random.PRNGKey(0)
    k_xs, k_w, k_b = jax.random.split(key, 3)

    T = 8  # sequence length
    xs = jax.random.normal(k_xs, (T, 3, 4), dtype=jnp.float32)
    # Deterministic Linear(4, 4) params (uniform in [-0.5, 0.5], torch-like scale).
    weight = jax.random.uniform(k_w, (4, 4), jnp.float32, -0.5, 0.5)
    bias = jax.random.uniform(k_b, (4,), jnp.float32, -0.5, 0.5)

    out = wrap_rnn_forward(xs, weight, bias)
    jax.block_until_ready(out)

    ref = _reference(xs, weight, bias)
    assert out.shape == (3, 4) and out.dtype == jnp.float32
    assert jnp.allclose(out, ref, atol=1e-5, rtol=1e-5), (out, ref)
    print("KERNEL_OK")
</pallas_src>

<mosaic_0001>
module attributes {stable_mosaic.version = 11 : i64} {
  func.func @_wrap_rnn_kernel(%arg0: memref<8x12xf32, #tpu.memory_space<vmem>>, %arg1: memref<12x12xf32, #tpu.memory_space<vmem>>, %arg2: memref<1x12xf32, #tpu.memory_space<vmem>>, %arg3: memref<1x12xf32, #tpu.memory_space<vmem>>) attributes {dimension_semantics = [], scalar_prefetch = 0 : i64, scratch_operands = 0 : i64, tpu.core_type = #tpu.core_type<tc>} {
    %c0 = arith.constant 0 : index
    %c0_0 = arith.constant 0 : index
    %0 = vector.load %arg0[%c0, %c0_0] : memref<8x12xf32, #tpu.memory_space<vmem>>, vector<8x12xf32>
    %c0_1 = arith.constant 0 : index
    %c0_2 = arith.constant 0 : index
    %1 = vector.load %arg1[%c0_1, %c0_2] : memref<12x12xf32, #tpu.memory_space<vmem>>, vector<12x12xf32>
    %cst = arith.constant dense<0.000000e+00> : vector<8x12xf32>
    %2 = tpu.matmul %0, %1, %cst {dimension_numbers = #tpu.dot_dimension_numbers<[1], [0], [0], [1], [0, 0, 1, 1], [], []>, precision = #tpu.contract_precision<fp32>} : vector<8x12xf32>, vector<12x12xf32>, vector<8x12xf32> -> vector<8x12xf32>
    %c0_3 = arith.constant 0 : index
    %c0_4 = arith.constant 0 : index
    %3 = vector.load %arg2[%c0_3, %c0_4] : memref<1x12xf32, #tpu.memory_space<vmem>>, vector<1x12xf32>
    %4 = vector.broadcast %3 : vector<1x12xf32> to vector<8x12xf32>
    %5 = arith.addf %2, %4 : vector<8x12xf32>
    %cst_5 = arith.constant dense<0.000000e+00> : vector<8xf32>
    %6 = vector.multi_reduction <add>, %5, %cst_5 [1] : vector<8x12xf32> to vector<8xf32>
    %7 = vector.shape_cast %6 : vector<8xf32> to vector<8x1xf32>
    %cst_6 = arith.constant 0.000000e+00 : f32
    %8 = vector.broadcast %cst_6 : f32 to vector<8x1xf32>
    %9 = arith.cmpf ogt, %7, %8 : vector<8x1xf32>
    %cst_7 = arith.constant 0.000000e+00 : f32
    %10 = vector.broadcast %cst_7 : f32 to vector<8x12xf32>
    %11 = arith.subf %10, %5 : vector<8x12xf32>
    %12 = vector.shape_cast %9 : vector<8x1xi1> to vector<8x1xi1>
    %13 = vector.broadcast %12 : vector<8x1xi1> to vector<8x12xi1>
    %14 = arith.select %13, %5, %11 : vector<8x12xi1>, vector<8x12xf32>
    %cst_8 = arith.constant 0.000000e+00 : f32
    %15 = vector.broadcast %cst_8 : f32 to vector<1x12xf32>
    %16 = vector.extract_strided_slice %14 {offsets = [0, 0], sizes = [1, 12], strides = [1, 1]} : vector<8x12xf32> to vector<1x12xf32>
    %17 = arith.addf %16, %15 : vector<1x12xf32>
    %18 = math.tanh %17 : vector<1x12xf32>
    %19 = vector.extract_strided_slice %14 {offsets = [1, 0], sizes = [1, 12], strides = [1, 1]} : vector<8x12xf32> to vector<1x12xf32>
    %20 = arith.addf %19, %18 : vector<1x12xf32>
    %21 = math.tanh %20 : vector<1x12xf32>
    %22 = vector.extract_strided_slice %14 {offsets = [2, 0], sizes = [1, 12], strides = [1, 1]} : vector<8x12xf32> to vector<1x12xf32>
    %23 = arith.addf %22, %21 : vector<1x12xf32>
    %24 = math.tanh %23 : vector<1x12xf32>
    %25 = vector.extract_strided_slice %14 {offsets = [3, 0], sizes = [1, 12], strides = [1, 1]} : vector<8x12xf32> to vector<1x12xf32>
    %26 = arith.addf %25, %24 : vector<1x12xf32>
    %27 = math.tanh %26 : vector<1x12xf32>
    %28 = vector.extract_strided_slice %14 {offsets = [4, 0], sizes = [1, 12], strides = [1, 1]} : vector<8x12xf32> to vector<1x12xf32>
    %29 = arith.addf %28, %27 : vector<1x12xf32>
    %30 = math.tanh %29 : vector<1x12xf32>
    %31 = vector.extract_strided_slice %14 {offsets = [5, 0], sizes = [1, 12], strides = [1, 1]} : vector<8x12xf32> to vector<1x12xf32>
    %32 = arith.addf %31, %30 : vector<1x12xf32>
    %33 = math.tanh %32 : vector<1x12xf32>
    %34 = vector.extract_strided_slice %14 {offsets = [6, 0], sizes = [1, 12], strides = [1, 1]} : vector<8x12xf32> to vector<1x12xf32>
    %35 = arith.addf %34, %33 : vector<1x12xf32>
    %36 = math.tanh %35 : vector<1x12xf32>
    %37 = vector.extract_strided_slice %14 {offsets = [7, 0], sizes = [1, 12], strides = [1, 1]} : vector<8x12xf32> to vector<1x12xf32>
    %38 = arith.addf %37, %36 : vector<1x12xf32>
    %39 = math.tanh %38 : vector<1x12xf32>
    %cst_9 = arith.constant 0.000000e+00 : f32
    %40 = vector.broadcast %cst_9 : f32 to vector<1x12xf32>
    %41 = arith.maximumf %39, %40 : vector<1x12xf32>
    %c0_10 = arith.constant 0 : index
    %c0_11 = arith.constant 0 : index
    %42 = vector.load %arg3[%c0_10, %c0_11] : memref<1x12xf32, #tpu.memory_space<vmem>>, vector<1x12xf32>
    tpu.vector_store %arg3[%c0_10, %c0_11], %41 {strides = array<i32>} : memref<1x12xf32, #tpu.memory_space<vmem>>, vector<1x12xf32>,
    return
  }
}

</mosaic_0001>

<llo_original>
// kernel: tpu_custom_call.1
$region0: #{tpu_custom_call.1}
  #allocation0 [shape = 'u32[]', space=smem, size = 0x4, offset = 0x4, fixed_abs, tag = 'smem constant byte address 0x4 - core index']
  #allocation1 [shape = 'u32[144,128]{1,0:T(1,128)}', space=vmem, size = 0x12000, scoped, tag = 'internal scratch']
  %s0 = inlined_call_operand.hbm [shape: f32[8,12], index: 0, kind: input, shape index: {}]
  %s1 = inlined_call_operand.hbm [shape: f32[12,12], index: 1, kind: input, shape index: {}]
  %s2 = inlined_call_operand.vmem [shape: f32[1,12], index: 2, kind: input, shape index: {}]
  %s3 = inlined_call_operand.hbm [shape: f32[1,12], index: 3, kind: output, shape index: {}]
  %s4 = sld [smem:[#allocation0]]
  $region30: #{tpu_custom_call.1} parent=0
    _
  %s6 = ssub.s32 1, %s4
  %s7 = scalar_select 0, %s6, %s4
  $region1: #{tpu_custom_call.1} parent=0
    #allocation2 [shape = 'u8[4096]{0}', space=vmem, size = 0x1000, scoped, tag = 'input window, operand 0, single buffered']
    #allocation3 [shape = 's32[1]{0}', space=sflag, size = 0x4, scoped, tag = 'scoped memory for tpu_custom_call.1']
    #allocation4 [shape = 's32[1]{0}', space=sflag, size = 0x4, scoped, tag = 'scoped memory for tpu_custom_call.1']
    #allocation5 [shape = 'u8[8192]{0}', space=vmem, size = 0x2000, scoped, tag = 'input window, operand 1, single buffered']
    #allocation6 [shape = 's32[1]{0}', space=sflag, size = 0x4, scoped, tag = 'scoped memory for tpu_custom_call.1']
    #allocation7 [shape = 'u8[512]{0}', space=vmem, size = 0x400, scoped, tag = 'output window, operand 0, single buffered']
    %8 = vsyncpa [#allocation3], 0
    %9 = vsyncpa [#allocation6], 0
    %10 = vsyncpa [#allocation4], 0
    // Predicated region
    $region2: #{tpu_custom_call.1} parent=1 // pred_check
      _
    $region3: #{tpu_custom_call.1} parent=1 // pred_check_branch
      %12 = sbr.rel (0) target = $region5
    $region4: #{tpu_custom_call.1} parent=1 // pred_region
      %s14 = ssub.s32 128, 128
      %15 = vsyncadd [#allocation3], %s14
      %s17 = sshll.u32 [#allocation2], 4
      %s18 = int_to_ptr.vmem [resolvable:$true] %s17
      %20 = dma.hbm_to_vmem [thread:$0]  %s0, 128, %s18, [#allocation3]
    $region5: #{tpu_custom_call.1} parent=1 // pred_fallthru
      _
    // Predicated region
    $region6: #{tpu_custom_call.1} parent=1 // pred_check
      _
    $region7: #{tpu_custom_call.1} parent=1 // pred_check_branch
      %22 = sbr.rel (0) target = $region9
    $region8: #{tpu_custom_call.1} parent=1 // pred_region
      %s24 = ssub.s32 256, 256
      %25 = vsyncadd [#allocation6], %s24
      %s26 = sshll.u32 [#allocation5], 4
      %s27 = int_to_ptr.vmem [resolvable:$true] %s26
      %32 = dma.hbm_to_vmem [thread:$0]  %s1, 256, %s27, [#allocation6], 128, 128, 8
    $region9: #{tpu_custom_call.1} parent=1 // pred_fallthru
      _
    // Predicated region
    $region10: #{tpu_custom_call.1} parent=1 // pred_check
      _
    $region11: #{tpu_custom_call.1} parent=1 // pred_check_branch
      %34 = sbr.rel (0) target = $region13
    $region12: #{tpu_custom_call.1} parent=1 // pred_region
      _
    $region13: #{tpu_custom_call.1} parent=1 // pred_fallthru
      _
    // Predicated region
    $region14: #{tpu_custom_call.1} parent=1 // pred_check
      _
    $region15: #{tpu_custom_call.1} parent=1 // pred_check_branch
      %36 = sbr.rel (0) target = $region17
    $region16: #{tpu_custom_call.1} parent=1 // pred_region
      %37 = dma.done [#allocation3], 128
    $region17: #{tpu_custom_call.1} parent=1 // pred_fallthru
      _
    // Predicated region
    $region18: #{tpu_custom_call.1} parent=1 // pred_check
      _
    $region19: #{tpu_custom_call.1} parent=1 // pred_check_branch
      %39 = sbr.rel (0) target = $region21
    $region20: #{tpu_custom_call.1} parent=1 // pred_region
      %40 = dma.done [#allocation6], 256
    $region21: #{tpu_custom_call.1} parent=1 // pred_fallthru
      _
    %v41 = vld [vmem:[#allocation2] sm:$0xff]
    %v42 = vld [vmem:[#allocation5] sm:$0xff]
    %v43 = vld [vmem:[#allocation5 + $0x8] sm:$0xf]
    %v44 = vld [vmem:[%s2] sm:$0x1]
    %v46 = vlaneseq
    %v47 = vshrl.u32 %v46, 7
    %v48 = vsub.s32 0, %v47
    %v49 = vrot.slane %v44, %v48
    %vm51 = vcmask 97280
    %v53 = vsel %vm51, %v41, 0
    %vm55 = vcmask 1043456
    %v57 = vsel %vm55, %v43, 0
    %59 = vmatprep.subr.mxu0 0.0
    %60 = vmatpush1.msra.mxu0 0.0
    %61 = vmatprep.subr.mxu0 0.0
    %62 = vmatpush1.msra.mxu0 0.0
    %63 = vmatprep.subr.mxu0 0.0
    %64 = vmatpush1.msra.mxu0 0.0
    %65 = vmatprep.subr.mxu0 0.0
    %66 = vmatpush1.msra.mxu0 0.0
    %67 = vmatprep.subr.mxu0 0.0
    %68 = vmatpush1.msra.mxu0 0.0
    %69 = vmatprep.subr.mxu0 0.0
    %70 = vmatpush1.msra.mxu0 0.0
    %71 = vmatprep.subr.mxu0 0.0
    %72 = vmatpush1.msra.mxu0 0.0
    %73 = vmatprep.subr.mxu0 0.0
    %74 = vmatpush1.msra.mxu0 0.0
    %75 = vmatprep.subr.mxu0 0.0
    %76 = vmatpush1.msra.mxu0 0.0
    %77 = vmatprep.subr.mxu0 0.0
    %78 = vmatpush1.msra.mxu0 0.0
    %79 = vmatprep.subr.mxu0 0.0
    %80 = vmatpush1.msra.mxu0 0.0
    %81 = vmatprep.subr.mxu0 0.0
    %82 = vmatpush1.msra.mxu0 0.0
    %83 = vmatprep.subr.mxu0 0.0
    %84 = vmatpush1.msra.mxu0 0.0
    %85 = vmatprep.subr.mxu0 0.0
    %86 = vmatpush1.msra.mxu0 0.0
    %87 = vmatprep.subr.mxu0 0.0
    %v88 = vand.u32 %v57, 4294901760
    %89 = vmatpush1.msra.mxu0 %v88
    %90 = vmatprep.subr.mxu0 0.0
    %v91 = vand.u32 %v42, 4294901760
    %92 = vmatpush1.msra.mxu0 %v91
    %93 = vmatprep.subr.mxu0 0.0
    %94 = vmatpush2.msra.mxu0 0.0
    %95 = vmatprep.subr.mxu0 0.0
    %96 = vmatpush2.msra.mxu0 0.0
    %97 = vmatprep.subr.mxu0 0.0
    %98 = vmatpush2.msra.mxu0 0.0
    %99 = vmatprep.subr.mxu0 0.0
    %100 = vmatpush2.msra.mxu0 0.0
    %101 = vmatprep.subr.mxu0 0.0
    %102 = vmatpush2.msra.mxu0 0.0
    %103 = vmatprep.subr.mxu0 0.0
    %104 = vmatpush2.msra.mxu0 0.0
    %105 = vmatprep.subr.mxu0 0.0
    %106 = vmatpush2.msra.mxu0 0.0
    %107 = vmatprep.subr.mxu0 0.0
    %108 = vmatpush2.msra.mxu0 0.0
    %109 = vmatprep.subr.mxu0 0.0
    %110 = vmatpush2.msra.mxu0 0.0
    %111 = vmatprep.subr.mxu0 0.0
    %112 = vmatpush2.msra.mxu0 0.0
    %113 = vmatprep.subr.mxu0 0.0
    %114 = vmatpush2.msra.mxu0 0.0
    %115 = vmatprep.subr.mxu0 0.0
    %116 = vmatpush2.msra.mxu0 0.0
    %117 = vmatprep.subr.mxu0 0.0
    %118 = vmatpush2.msra.mxu0 0.0
    %119 = vmatprep.subr.mxu0 0.0
    %120 = vmatpush2.msra.mxu0 0.0
    %121 = vmatprep.subr.mxu0 0.0
    %122 = vmatpush2.msra.mxu0 0.0
    %123 = vmatprep.subr.mxu0 0.0
    %124 = vmatpush2.msra.mxu0 0.0
    %125 = vmatprep.mubr.f32.mxu0 0.0
    %v126 = vand.u32 %v53, 4294901760
    %v127 = vsub.f32 %v53, %v126
    %v128 = vand.u32 %v127, 4294901760
    %v129 = vsub.f32 %v127, %v128
    %v130 = vand.u32 %v129, 4294901760
    %131 = vmatmul.mubr.f32.gmra.mxu0 %v130
    %v132 = vpop.f32.mrf.mxu0
    %v133 = vadd.f32 %v49, %v132
    %v134 = vpop.f32.mrf.mxu0
    %135 = vdwg.mxu0
    %136 = vmatprep.subr.mxu0 0.0
    %137 = vmatpush1.msra.mxu0 0.0
    %138 = vmatprep.subr.mxu0 0.0
    %139 = vmatpush1.msra.mxu0 0.0
    %140 = vmatprep.subr.mxu0 0.0
    %141 = vmatpush1.msra.mxu0 0.0
    %142 = vmatprep.subr.mxu0 0.0
    %143 = vmatpush1.msra.mxu0 0.0
    %144 = vmatprep.subr.mxu0 0.0
    %145 = vmatpush1.msra.mxu0 0.0
    %146 = vmatprep.subr.mxu0 0.0
    %147 = vmatpush1.msra.mxu0 0.0
    %148 = vmatprep.subr.mxu0 0.0
    %149 = vmatpush1.msra.mxu0 0.0
    %150 = vmatprep.subr.mxu0 0.0
    %151 = vmatpush1.msra.mxu0 0.0
    %152 = vmatprep.subr.mxu0 0.0
    %153 = vmatpush1.msra.mxu0 0.0
    %154 = vmatprep.subr.mxu0 0.0
    %155 = vmatpush1.msra.mxu0 0.0
    %156 = vmatprep.subr.mxu0 0.0
    %157 = vmatpush1.msra.mxu0 0.0
    %158 = vmatprep.subr.mxu0 0.0
    %159 = vmatpush1.msra.mxu0 0.0
    %160 = vmatprep.subr.mxu0 0.0
    %161 = vmatpush1.msra.mxu0 0.0
    %162 = vmatprep.subr.mxu0 0.0
    %163 = vmatpush1.msra.mxu0 0.0
    %164 = vmatprep.subr.mxu0 0.0
    %v165 = vand.u32 %v57, 4294901760
    %v166 = vsub.f32 %v57, %v165
    %v167 = vand.u32 %v166, 4294901760
    %v168 = vsub.f32 %v166, %v167
    %v169 = vand.u32 %v168, 4294901760
    %170 = vmatpush1.msra.mxu0 %v169
    %171 = vmatprep.subr.mxu0 0.0
    %v172 = vand.u32 %v42, 4294901760
    %v173 = vsub.f32 %v42, %v172
    %v174 = vand.u32 %v173, 4294901760
    %v175 = vsub.f32 %v173, %v174
    %v176 = vand.u32 %v175, 4294901760
    %177 = vmatpush1.msra.mxu0 %v176
    %178 = vmatprep.subr.mxu0 0.0
    %179 = vmatpush2.msra.mxu0 0.0
    %180 = vmatprep.subr.mxu0 0.0
    %181 = vmatpush2.msra.mxu0 0.0
    %182 = vmatprep.subr.mxu0 0.0
    %183 = vmatpush2.msra.mxu0 0.0
    %184 = vmatprep.subr.mxu0 0.0
    %185 = vmatpush2.msra.mxu0 0.0
    %186 = vmatprep.subr.mxu0 0.0
    %187 = vmatpush2.msra.mxu0 0.0
    %188 = vmatprep.subr.mxu0 0.0
    %189 = vmatpush2.msra.mxu0 0.0
    %190 = vmatprep.subr.mxu0 0.0
    %191 = vmatpush2.msra.mxu0 0.0
    %192 = vmatprep.subr.mxu0 0.0
    %193 = vmatpush2.msra.mxu0 0.0
    %194 = vmatprep.subr.mxu0 0.0
    %195 = vmatpush2.msra.mxu0 0.0
    %196 = vmatprep.subr.mxu0 0.0
    %197 = vmatpush2.msra.mxu0 0.0
    %198 = vmatprep.subr.mxu0 0.0
    %199 = vmatpush2.msra.mxu0 0.0
    %200 = vmatprep.subr.mxu0 0.0
    %201 = vmatpush2.msra.mxu0 0.0
    %202 = vmatprep.subr.mxu0 0.0
    %203 = vmatpush2.msra.mxu0 0.0
    %204 = vmatprep.subr.mxu0 0.0
    %205 = vmatpush2.msra.mxu0 0.0
    %206 = vmatprep.subr.mxu0 0.0
    %207 = vmatpush2.msra.mxu0 0.0
    %208 = vmatprep.subr.mxu0 0.0
    %209 = vmatpush2.msra.mxu0 0.0
    %210 = vmatprep.mubr.f32.mxu0 0.0
    %v211 = vand.u32 %v53, 4294901760
    %212 = vmatmul.mubr.f32.gmra.mxu0 %v211
    %v213 = vpop.f32.mrf.mxu0
    %v214 = vadd.f32 %v133, %v213
    %v215 = vpop.f32.mrf.mxu0
    %216 = vdwg.mxu0
    %217 = vmatprep.subr.mxu0 0.0
    %218 = vmatpush1.msra.mxu0 0.0
    %219 = vmatprep.subr.mxu0 0.0
    %220 = vmatpush1.msra.mxu0 0.0
    %221 = vmatprep.subr.mxu0 0.0
    %222 = vmatpush1.msra.mxu0 0.0
    %223 = vmatprep.subr.mxu0 0.0
    %224 = vmatpush1.msra.mxu0 0.0
    %225 = vmatprep.subr.mxu0 0.0
    %226 = vmatpush1.msra.mxu0 0.0
    %227 = vmatprep.subr.mxu0 0.0
    %228 = vmatpush1.msra.mxu0 0.0
    %229 = vmatprep.subr.mxu0 0.0
    %230 = vmatpush1.msra.mxu0 0.0
    %231 = vmatprep.subr.mxu0 0.0
    %232 = vmatpush1.msra.mxu0 0.0
    %233 = vmatprep.subr.mxu0 0.0
    %234 = vmatpush1.msra.mxu0 0.0
    %235 = vmatprep.subr.mxu0 0.0
    %236 = vmatpush1.msra.mxu0 0.0
    %237 = vmatprep.subr.mxu0 0.0
    %238 = vmatpush1.msra.mxu0 0.0
    %239 = vmatprep.subr.mxu0 0.0
    %240 = vmatpush1.msra.mxu0 0.0
    %241 = vmatprep.subr.mxu0 0.0
    %242 = vmatpush1.msra.mxu0 0.0
    %243 = vmatprep.subr.mxu0 0.0
    %244 = vmatpush1.msra.mxu0 0.0
    %245 = vmatprep.subr.mxu0 0.0
    %v246 = vand.u32 %v57, 4294901760
    %v247 = vsub.f32 %v57, %v246
    %248 = vmatpush1.msra.mxu0 %v247
    %249 = vmatprep.subr.mxu0 0.0
    %v250 = vand.u32 %v42, 4294901760
    %v251 = vsub.f32 %v42, %v250
    %252 = vmatpush1.msra.mxu0 %v251
    %253 = vmatprep.subr.mxu0 0.0
    %254 = vmatpush2.msra.mxu0 0.0
    %255 = vmatprep.subr.mxu0 0.0
    %256 = vmatpush2.msra.mxu0 0.0
    %257 = vmatprep.subr.mxu0 0.0
    %258 = vmatpush2.msra.mxu0 0.0
    %259 = vmatprep.subr.mxu0 0.0
    %260 = vmatpush2.msra.mxu0 0.0
    %261 = vmatprep.subr.mxu0 0.0
    %262 = vmatpush2.msra.mxu0 0.0
    %263 = vmatprep.subr.mxu0 0.0
    %264 = vmatpush2.msra.mxu0 0.0
    %265 = vmatprep.subr.mxu0 0.0
    %266 = vmatpush2.msra.mxu0 0.0
    %267 = vmatprep.subr.mxu0 0.0
    %268 = vmatpush2.msra.mxu0 0.0
    %269 = vmatprep.subr.mxu0 0.0
    %270 = vmatpush2.msra.mxu0 0.0
    %271 = vmatprep.subr.mxu0 0.0
    %272 = vmatpush2.msra.mxu0 0.0
    %273 = vmatprep.subr.mxu0 0.0
    %274 = vmatpush2.msra.mxu0 0.0
    %275 = vmatprep.subr.mxu0 0.0
    %276 = vmatpush2.msra.mxu0 0.0
    %277 = vmatprep.subr.mxu0 0.0
    %278 = vmatpush2.msra.mxu0 0.0
    %279 = vmatprep.subr.mxu0 0.0
    %280 = vmatpush2.msra.mxu0 0.0
    %281 = vmatprep.subr.mxu0 0.0
    %282 = vmatpush2.msra.mxu0 0.0
    %283 = vmatprep.subr.mxu0 0.0
    %284 = vmatpush2.msra.mxu0 0.0
    %285 = vmatprep.mubr.f32.mxu0 0.0
    %v286 = vand.u32 %v53, 4294901760
    %v287 = vsub.f32 %v53, %v286
    %288 = vmatmul.mubr.f32.gmra.mxu0 %v287
    %v289 = vpop.f32.mrf.mxu0
    %v290 = vadd.f32 %v214, %v289
    %v291 = vpop.f32.mrf.mxu0
    %292 = vdwg.mxu0
    %293 = vmatprep.subr.mxu0 0.0
    %294 = vmatpush1.msra.mxu0 0.0
    %295 = vmatprep.subr.mxu0 0.0
    %296 = vmatpush1.msra.mxu0 0.0
    %297 = vmatprep.subr.mxu0 0.0
    %298 = vmatpush1.msra.mxu0 0.0
    %299 = vmatprep.subr.mxu0 0.0
    %300 = vmatpush1.msra.mxu0 0.0
    %301 = vmatprep.subr.mxu0 0.0
    %302 = vmatpush1.msra.mxu0 0.0
    %303 = vmatprep.subr.mxu0 0.0
    %304 = vmatpush1.msra.mxu0 0.0
    %305 = vmatprep.subr.mxu0 0.0
    %306 = vmatpush1.msra.mxu0 0.0
    %307 = vmatprep.subr.mxu0 0.0
    %308 = vmatpush1.msra.mxu0 0.0
    %309 = vmatprep.subr.mxu0 0.0
    %310 = vmatpush1.msra.mxu0 0.0
    %311 = vmatprep.subr.mxu0 0.0
    %312 = vmatpush1.msra.mxu0 0.0
    %313 = vmatprep.subr.mxu0 0.0
    %314 = vmatpush1.msra.mxu0 0.0
    %315 = vmatprep.subr.mxu0 0.0
    %316 = vmatpush1.msra.mxu0 0.0
    %317 = vmatprep.subr.mxu0 0.0
    %318 = vmatpush1.msra.mxu0 0.0
    %319 = vmatprep.subr.mxu0 0.0
    %320 = vmatpush1.msra.mxu0 0.0
    %321 = vmatprep.subr.mxu0 0.0
    %v322 = vand.u32 %v57, 4294901760
    %323 = vmatpush1.msra.mxu0 %v322
    %324 = vmatprep.subr.mxu0 0.0
    %v325 = vand.u32 %v42, 4294901760
    %326 = vmatpush1.msra.mxu0 %v325
    %327 = vmatprep.subr.mxu0 0.0
    %328 = vmatpush2.msra.mxu0 0.0
    %329 = vmatprep.subr.mxu0 0.0
    %330 = vmatpush2.msra.mxu0 0.0
    %331 = vmatprep.subr.mxu0 0.0
    %332 = vmatpush2.msra.mxu0 0.0
    %333 = vmatprep.subr.mxu0 0.0
    %334 = vmatpush2.msra.mxu0 0.0
    %335 = vmatprep.subr.mxu0 0.0
    %336 = vmatpush2.msra.mxu0 0.0
    %337 = vmatprep.subr.mxu0 0.0
    %338 = vmatpush2.msra.mxu0 0.0
    %339 = vmatprep.subr.mxu0 0.0
    %340 = vmatpush2.msra.mxu0 0.0
    %341 = vmatprep.subr.mxu0 0.0
    %342 = vmatpush2.msra.mxu0 0.0
    %343 = vmatprep.subr.mxu0 0.0
    %344 = vmatpush2.msra.mxu0 0.0
    %345 = vmatprep.subr.mxu0 0.0
    %346 = vmatpush2.msra.mxu0 0.0
    %347 = vmatprep.subr.mxu0 0.0
    %348 = vmatpush2.msra.mxu0 0.0
    %349 = vmatprep.subr.mxu0 0.0
    %350 = vmatpush2.msra.mxu0 0.0
    %351 = vmatprep.subr.mxu0 0.0
    %352 = vmatpush2.msra.mxu0 0.0
    %353 = vmatprep.subr.mxu0 0.0
    %354 = vmatpush2.msra.mxu0 0.0
    %355 = vmatprep.subr.mxu0 0.0
    %356 = vmatpush2.msra.mxu0 0.0
    %357 = vmatprep.subr.mxu0 0.0
    %358 = vmatpush2.msra.mxu0 0.0
    %359 = vmatprep.mubr.f32.mxu0 0.0
    %v360 = vand.u32 %v53, 4294901760
    %v361 = vsub.f32 %v53, %v360
    %v362 = vand.u32 %v361, 4294901760
    %363 = vmatmul.mubr.f32.gmra.mxu0 %v362
    %v364 = vpop.f32.mrf.mxu0
    %v365 = vadd.f32 %v290, %v364
    %v366 = vpop.f32.mrf.mxu0
    %367 = vdwg.mxu0
    %368 = vmatprep.subr.mxu0 0.0
    %369 = vmatpush1.msra.mxu0 0.0
    %370 = vmatprep.subr.mxu0 0.0
    %371 = vmatpush1.msra.mxu0 0.0
    %372 = vmatprep.subr.mxu0 0.0
    %373 = vmatpush1.msra.mxu0 0.0
    %374 = vmatprep.subr.mxu0 0.0
    %375 = vmatpush1.msra.mxu0 0.0
    %376 = vmatprep.subr.mxu0 0.0
    %377 = vmatpush1.msra.mxu0 0.0
    %378 = vmatprep.subr.mxu0 0.0
    %379 = vmatpush1.msra.mxu0 0.0
    %380 = vmatprep.subr.mxu0 0.0
    %381 = vmatpush1.msra.mxu0 0.0
    %382 = vmatprep.subr.mxu0 0.0
    %383 = vmatpush1.msra.mxu0 0.0
    %384 = vmatprep.subr.mxu0 0.0
    %385 = vmatpush1.msra.mxu0 0.0
    %386 = vmatprep.subr.mxu0 0.0
    %387 = vmatpush1.msra.mxu0 0.0
    %388 = vmatprep.subr.mxu0 0.0
    %389 = vmatpush1.msra.mxu0 0.0
    %390 = vmatprep.subr.mxu0 0.0
    %391 = vmatpush1.msra.mxu0 0.0
    %392 = vmatprep.subr.mxu0 0.0
    %393 = vmatpush1.msra.mxu0 0.0
    %394 = vmatprep.subr.mxu0 0.0
    %395 = vmatpush1.msra.mxu0 0.0
    %396 = vmatprep.subr.mxu0 0.0
    %v397 = vand.u32 %v57, 4294901760
    %v398 = vsub.f32 %v57, %v397
    %v399 = vand.u32 %v398, 4294901760
    %400 = vmatpush1.msra.mxu0 %v399
    %401 = vmatprep.subr.mxu0 0.0
    %v402 = vand.u32 %v42, 4294901760
    %v403 = vsub.f32 %v42, %v402
    %v404 = vand.u32 %v403, 4294901760
    %405 = vmatpush1.msra.mxu0 %v404
    %406 = vmatprep.subr.mxu0 0.0
    %407 = vmatpush2.msra.mxu0 0.0
    %408 = vmatprep.subr.mxu0 0.0
    %409 = vmatpush2.msra.mxu0 0.0
    %410 = vmatprep.subr.mxu0 0.0
    %411 = vmatpush2.msra.mxu0 0.0
    %412 = vmatprep.subr.mxu0 0.0
    %413 = vmatpush2.msra.mxu0 0.0
    %414 = vmatprep.subr.mxu0 0.0
    %415 = vmatpush2.msra.mxu0 0.0
    %416 = vmatprep.subr.mxu0 0.0
    %417 = vmatpush2.msra.mxu0 0.0
    %418 = vmatprep.subr.mxu0 0.0
    %419 = vmatpush2.msra.mxu0 0.0
    %420 = vmatprep.subr.mxu0 0.0
    %421 = vmatpush2.msra.mxu0 0.0
    %422 = vmatprep.subr.mxu0 0.0
    %423 = vmatpush2.msra.mxu0 0.0
    %424 = vmatprep.subr.mxu0 0.0
    %425 = vmatpush2.msra.mxu0 0.0
    %426 = vmatprep.subr.mxu0 0.0
    %427 = vmatpush2.msra.mxu0 0.0
    %428 = vmatprep.subr.mxu0 0.0
    %429 = vmatpush2.msra.mxu0 0.0
    %430 = vmatprep.subr.mxu0 0.0
    %431 = vmatpush2.msra.mxu0 0.0
    %432 = vmatprep.subr.mxu0 0.0
    %433 = vmatpush2.msra.mxu0 0.0
    %434 = vmatprep.subr.mxu0 0.0
    %435 = vmatpush2.msra.mxu0 0.0
    %436 = vmatprep.subr.mxu0 0.0
    %437 = vmatpush2.msra.mxu0 0.0
    %438 = vmatprep.mubr.f32.mxu0 0.0
    %v439 = vand.u32 %v53, 4294901760
    %440 = vmatmul.mubr.f32.gmra.mxu0 %v439
    %v441 = vpop.f32.mrf.mxu0
    %v442 = vadd.f32 %v365, %v441
    %v443 = vpop.f32.mrf.mxu0
    %444 = vdwg.mxu0
    %445 = vmatprep.subr.mxu0 0.0
    %446 = vmatpush1.msra.mxu0 0.0
    %447 = vmatprep.subr.mxu0 0.0
    %448 = vmatpush1.msra.mxu0 0.0
    %449 = vmatprep.subr.mxu0 0.0
    %450 = vmatpush1.msra.mxu0 0.0
    %451 = vmatprep.subr.mxu0 0.0
    %452 = vmatpush1.msra.mxu0 0.0
    %453 = vmatprep.subr.mxu0 0.0
    %454 = vmatpush1.msra.mxu0 0.0
    %455 = vmatprep.subr.mxu0 0.0
    %456 = vmatpush1.msra.mxu0 0.0
    %457 = vmatprep.subr.mxu0 0.0
    %458 = vmatpush1.msra.mxu0 0.0
    %459 = vmatprep.subr.mxu0 0.0
    %460 = vmatpush1.msra.mxu0 0.0
    %461 = vmatprep.subr.mxu0 0.0
    %462 = vmatpush1.msra.mxu0 0.0
    %463 = vmatprep.subr.mxu0 0.0
    %464 = vmatpush1.msra.mxu0 0.0
    %465 = vmatprep.subr.mxu0 0.0
    %466 = vmatpush1.msra.mxu0 0.0
    %467 = vmatprep.subr.mxu0 0.0
    %468 = vmatpush1.msra.mxu0 0.0
    %469 = vmatprep.subr.mxu0 0.0
    %470 = vmatpush1.msra.mxu0 0.0
    %471 = vmatprep.subr.mxu0 0.0
    %472 = vmatpush1.msra.mxu0 0.0
    %473 = vmatprep.subr.mxu0 0.0
    %v474 = vand.u32 %v57, 4294901760
    %475 = vmatpush1.msra.mxu0 %v474
    %476 = vmatprep.subr.mxu0 0.0
    %v477 = vand.u32 %v42, 4294901760
    %478 = vmatpush1.msra.mxu0 %v477
    %479 = vmatprep.subr.mxu0 0.0
    %480 = vmatpush2.msra.mxu0 0.0
    %481 = vmatprep.subr.mxu0 0.0
    %482 = vmatpush2.msra.mxu0 0.0
    %483 = vmatprep.subr.mxu0 0.0
    %484 = vmatpush2.msra.mxu0 0.0
    %485 = vmatprep.subr.mxu0 0.0
    %486 = vmatpush2.msra.mxu0 0.0
    %487 = vmatprep.subr.mxu0 0.0
    %488 = vmatpush2.msra.mxu0 0.0
    %489 = vmatprep.subr.mxu0 0.0
    %490 = vmatpush2.msra.mxu0 0.0
    %491 = vmatprep.subr.mxu0 0.0
    %492 = vmatpush2.msra.mxu0 0.0
    %493 = vmatprep.subr.mxu0 0.0
    %494 = vmatpush2.msra.mxu0 0.0
    %495 = vmatprep.subr.mxu0 0.0
    %496 = vmatpush2.msra.mxu0 0.0
    %497 = vmatprep.subr.mxu0 0.0
    %498 = vmatpush2.msra.mxu0 0.0
    %499 = vmatprep.subr.mxu0 0.0
    %500 = vmatpush2.msra.mxu0 0.0
    %501 = vmatprep.subr.mxu0 0.0
    %502 = vmatpush2.msra.mxu0 0.0
    %503 = vmatprep.subr.mxu0 0.0
    %504 = vmatpush2.msra.mxu0 0.0
    %505 = vmatprep.subr.mxu0 0.0
    %506 = vmatpush2.msra.mxu0 0.0
    %507 = vmatprep.subr.mxu0 0.0
    %508 = vmatpush2.msra.mxu0 0.0
    %509 = vmatprep.subr.mxu0 0.0
    %510 = vmatpush2.msra.mxu0 0.0
    %511 = vmatprep.mubr.f32.mxu0 0.0
    %v512 = vand.u32 %v53, 4294901760
    %513 = vmatmul.mubr.f32.gmra.mxu0 %v512
    %v514 = vpop.f32.mrf.mxu0
    %v515 = vadd.f32 %v442, %v514
    %v516 = vpop.f32.mrf.mxu0
    %517 = vdwg.mxu0
    %v518 = vsel %vm51, %v515, 0.0
    %519 = vadd.xlane.f32.xlu0 %v518
    %v520 = vpop.xlane.xlu0 %519
    %vm521 = vcmp.gt.f32.partialorder %v520, 0.0
    %v522 = vsub.f32 0.0, %v515
    %v523 = vsel %vm521, 1, 0
    %vm524 = vcmp.eq.s32.totalorder %v523, 1
    %v525 = vsel %vm524, %v515, %v522
    %v526 = vadd.f32 %v525, 0.0
    %v527 = vtanh.pop %v526
    %v529 = vrot.slane %v527, 7
    %v531 = vadd.f32 %v525, %v529
    %v532 = vtanh.pop %v531
    %v534 = vrot.slane %v532, 7
    %v536 = vadd.f32 %v525, %v534
    %v537 = vtanh.pop %v536
    %v539 = vrot.slane %v537, 7
    %v541 = vadd.f32 %v525, %v539
    %v542 = vtanh.pop %v541
    %v544 = vrot.slane %v542, 7
    %v546 = vadd.f32 %v525, %v544
    %v547 = vtanh.pop %v546
    %v549 = vrot.slane %v547, 7
    %v551 = vadd.f32 %v525, %v549
    %v552 = vtanh.pop %v551
    %v554 = vrot.slane %v552, 7
    %v556 = vadd.f32 %v525, %v554
    %v557 = vtanh.pop %v556
    %v559 = vrot.slane %v557, 7
    %v561 = vadd.f32 %v525, %v559
    %v562 = vtanh.pop %v561
    %v563 = vmax.f32 %v562, 0.0
    %vm564 = vcmask 97287
    %565 = vst.msk [vmem:[#allocation7 - $0x7] sm:$0x80] %vm564, %v563
    // Predicated region
    $region22: #{tpu_custom_call.1} parent=1 // pred_check
      _
    $region23: #{tpu_custom_call.1} parent=1 // pred_check_branch
      %567 = sbr.rel (0) target = $region25
    $region24: #{tpu_custom_call.1} parent=1 // pred_region
      %s569 = ssub.s32 16, 16
      %570 = vsyncadd [#allocation4], %s569
      %s572 = sshll.u32 [#allocation7], 4
      %s573 = int_to_ptr.vmem [resolvable:$true] %s572
      %575 = dma.vmem_to_hbm [thread:$0]  %s573, 16, %s3, [#allocation4]
    $region25: #{tpu_custom_call.1} parent=1 // pred_fallthru
      _
    // Predicated region
    $region26: #{tpu_custom_call.1} parent=1 // pred_check
      _
    $region27: #{tpu_custom_call.1} parent=1 // pred_check_branch
      %577 = sbr.rel (0) target = $region29
    $region28: #{tpu_custom_call.1} parent=1 // pred_region
      %578 = dma.done [#allocation4], 16
    $region29: #{tpu_custom_call.1} parent=1 // pred_fallthru
      _
    %579 = vsyncpa [#allocation3], 1
    %580 = vsyncpa [#allocation6], 1
    %581 = vsyncpa [#allocation4], 1

</llo_original>
